<compile_context>
chip_gen: v6e
topology: v6e:2x2x1
jax: 0.10.0
libtpu: 0.0.40
codegen_flags: <defaults>
</compile_context>

<pallas_src>
import numpy as np
import jax
import jax.numpy as jnp
from jax.experimental import pallas as pl
from jax.experimental.pallas import tpu as pltpu


def _round_up(x, m):
    return ((x + m - 1) // m) * m


# ---------------------------------------------------------------------------
# Kernel 1: pairwise squared distances, tiled.
#   dist_ij = |xi|^2 + |xj|^2 - 2 <xi, xj>  via one augmented matmul per tile.
# ---------------------------------------------------------------------------
def _pairwise_dist_kernel(l_ref, r_ref, out_ref):
    # l_ref: (1, tm, 8)   columns: [x y z |p|^2 1 0 0 0]
    # r_ref: (1, 8, tn)   rows:    [-2x -2y -2z 1 |p|^2 0 0 0]
    out_ref[0] = jnp.dot(l_ref[0], r_ref[0], preferred_element_type=jnp.float32)


def _pick_dist_tile(n, target):
    """Largest tile <= target that divides n and is 128-aligned (or full n)."""
    if n <= target:
        return n
    t = (target // 128) * 128
    while t >= 128:
        if n % t == 0:
            return t
        t -= 128
    return n  # fallback: single full block per batch


def pairwise_distance(xyz_cf, *, tile=512):
    """xyz_cf: (B, 3, N) float32 coords (channels-first) -> (B, N, N) sq dists."""
    B, _, N = xyz_cf.shape
    xyz_cf = xyz_cf.astype(jnp.float32)
    x_nlc = jnp.transpose(xyz_cf, (0, 2, 1))                       # (B, N, 3)
    sq = jnp.sum(x_nlc * x_nlc, axis=-1, keepdims=True)            # (B, N, 1)
    ones_l = jnp.ones_like(sq)
    lhs = jnp.concatenate(
        [x_nlc, sq, ones_l, jnp.zeros((B, N, 3), jnp.float32)], axis=-1)  # (B,N,8)
    rhs = jnp.concatenate(
        [-2.0 * xyz_cf, jnp.ones((B, 1, N), jnp.float32),
         jnp.transpose(sq, (0, 2, 1)), jnp.zeros((B, 3, N), jnp.float32)],
        axis=1)                                                     # (B, 8, N)

    tm = tn = _pick_dist_tile(N, tile)
    grid = (B, N // tm, N // tn)
    return pl.pallas_call(
        _pairwise_dist_kernel,
        out_shape=jax.ShapeDtypeStruct((B, N, N), jnp.float32),
        grid=grid,
        in_specs=[
            pl.BlockSpec((1, tm, 8), lambda b, i, j: (b, i, 0)),
            pl.BlockSpec((1, 8, tn), lambda b, i, j: (b, 0, j)),
        ],
        out_specs=pl.BlockSpec((1, tm, tn), lambda b, i, j: (b, i, j)),
        compiler_params=pltpu.CompilerParams(
            dimension_semantics=("parallel", "parallel", "parallel"),
            vmem_limit_bytes=64 * 1024 * 1024),
    )(lhs, rhs)


# ---------------------------------------------------------------------------
# Kernel 2: fused LocalAggregation MLP + group-max + pw_conv MLP + residual+ReLU
# ---------------------------------------------------------------------------
def _invres_kernel(grouped_ref, ident_ref, wla_ref, w1_ref, w2_ref, out_ref):
    # grouped_ref: (1, tn, G, Cin)  ident_ref/out_ref: (1, C, tn) channels-first
    # wla: (Cin, C)   w1: (C, 4C)   w2: (4C, C)
    _, tn, G, Cin = grouped_ref.shape
    C = wla_ref.shape[1]

    g = grouped_ref[0].reshape(tn * G, Cin)                    # leading-dim fold
    # LocalAggregation 1x1 conv (bias=False) + ReLU  (f32 accumulation)
    h = jnp.maximum(
        jnp.dot(g, wla_ref[...], preferred_element_type=jnp.float32), 0.0)
    # max over the group (nsample) axis
    f = jnp.max(h.reshape(tn, G, C), axis=1)                   # (tn, C) f32
    # pw_conv: Conv1d(C->4C, bias=False) + ReLU + Conv1d(4C->C, bias=False)
    z = jnp.maximum(
        jnp.dot(f.astype(w1_ref.dtype), w1_ref[...],
                preferred_element_type=jnp.float32), 0.0)
    y = jnp.dot(z.astype(w2_ref.dtype), w2_ref[...],
                preferred_element_type=jnp.float32)            # (tn, C) f32
    # residual + final ReLU, stored channels-first (lane-dense along tn)
    out_ref[0] = jnp.maximum(y.T + ident_ref[0], 0.0).astype(out_ref.dtype)


def invres_fused(grouped, identity_cf, w_la, w1, w2, *, tile_n=256,
                 compute_dtype=jnp.float32):
    """grouped: (B, N, G, Cin) channels-last; identity_cf: (B, C, N).
    Returns new features channels-first: (B, C, N) float32."""
    B, N, G, Cin = grouped.shape
    C = identity_cf.shape[1]
    C4 = w1.shape[1]

    # --- pad Cin (MXU-K axis) to a multiple of 8 (zero rows added to w_la) ---
    Cin_pad = _round_up(Cin, 8)
    if Cin_pad != Cin:
        grouped = jnp.pad(grouped, ((0, 0), (0, 0), (0, 0), (0, Cin_pad - Cin)))
        w_la = jnp.pad(w_la, ((0, Cin_pad - Cin), (0, 0)))
    # --- pad G (sublane axis) to a multiple of 8; zero neighbours are inert
    #     because relu(W @ 0) = 0 never wins the max over the group ---
    G_pad = _round_up(G, 8)
    if G_pad != G:
        grouped = jnp.pad(grouped, ((0, 0), (0, 0), (0, G_pad - G), (0, 0)))

    # --- choose tile along N (128-aligned when tiling, else one full tile) ---
    if N > tile_n:
        tile = max(128, _round_up(tile_n, 128))
        N_pad = _round_up(N, tile)
    else:
        N_pad = _round_up(N, 8)
        tile = N_pad
    if N_pad != N:
        grouped = jnp.pad(grouped, ((0, 0), (0, N_pad - N), (0, 0), (0, 0)))
        identity_cf = jnp.pad(identity_cf, ((0, 0), (0, 0), (0, N_pad - N)))

    # --- dtypes: matmul operands in compute_dtype, residual/identity in f32 ---
    grouped = grouped.astype(compute_dtype)
    w_la = w_la.astype(compute_dtype)
    w1 = w1.astype(compute_dtype)
    w2 = w2.astype(compute_dtype)
    identity_cf = identity_cf.astype(jnp.float32)

    grid = (B, N_pad // tile)
    out = pl.pallas_call(
        _invres_kernel,
        out_shape=jax.ShapeDtypeStruct((B, C, N_pad), jnp.float32),
        grid=grid,
        in_specs=[
            pl.BlockSpec((1, tile, G_pad, Cin_pad), lambda b, i: (b, i, 0, 0)),
            pl.BlockSpec((1, C, tile), lambda b, i: (b, 0, i)),
            pl.BlockSpec((Cin_pad, C), lambda b, i: (0, 0)),
            pl.BlockSpec((C, C4), lambda b, i: (0, 0)),
            pl.BlockSpec((C4, C), lambda b, i: (0, 0)),
        ],
        out_specs=pl.BlockSpec((1, C, tile), lambda b, i: (b, 0, i)),
        compiler_params=pltpu.CompilerParams(
            dimension_semantics=("parallel", "parallel"),
            vmem_limit_bytes=64 * 1024 * 1024),
    )(grouped, identity_cf, w_la, w1, w2)
    if N_pad != N:
        out = out[:, :, :N]
    return out


# ---------------------------------------------------------------------------
# Glue: query_hybrid (top_k + ball mask) and index_points (gather)
# ---------------------------------------------------------------------------
def query_hybrid(radius, nsample, xyz_cf):
    """xyz_cf: (B, 3, N). Returns (B, N, nsample) int32 group indices."""
    dist = pairwise_distance(xyz_cf)                          # Pallas kernel
    neg_vals, idx = jax.lax.top_k(-dist, nsample)             # k smallest dists
    vals = -neg_vals
    mask = vals > (radius ** 2)
    group_idx = jnp.where(mask, idx[:, :, :1], idx)
    return group_idx.astype(jnp.int32)


def index_points(points, idx):
    """points: (B, N, D), idx: (B, S, G) -> (B, S, G, D)."""
    return jax.vmap(lambda p, i: p[i])(points, idx)


# ---------------------------------------------------------------------------
# Full InvResMLP forward
# ---------------------------------------------------------------------------
def invres_mlp_forward(points_coor, points_fea, params, *, radius, nsample,
                       tile_n=256, compute_dtype=jnp.float32, group_idx=None):
    """
    points_coor: (B, 3, N) float32 (channels-first, like the PyTorch module)
    points_fea : (B, C, N) float32
    returns [points_coor, new_fea] with new_fea: (B, C, N) float32
    """
    xyz_cf = points_coor[:, :3, :]                            # (B, 3, N)
    xyz = jnp.transpose(xyz_cf, (0, 2, 1))                    # (B, N, 3)

    # ---- grouping (G step) ----
    if group_idx is None:
        group_idx = query_hybrid(radius, nsample, xyz_cf)     # (B, N, G)
    grouped_coor = index_points(xyz, group_idx)               # (B, N, G, 3)
    grouped_coor = (grouped_coor - xyz[:, :, None, :]) / radius
    fea_nlc = jnp.transpose(points_fea, (0, 2, 1))            # (B, N, C)
    grouped_fea = index_points(fea_nlc, group_idx)            # (B, N, G, C)
    grouped = jnp.concatenate([grouped_fea, grouped_coor], axis=-1)
    # TODO(synk): fuse this gather + concat into the fused kernel via
    # scalar-prefetched indices so `grouped` never round-trips through HBM.

    # ---- fused P step + pw_conv + residual + ReLU (Pallas), channels-first out
    new_fea = invres_fused(grouped, points_fea,
                           params["w_la"], params["w1"], params["w2"],
                           tile_n=tile_n, compute_dtype=compute_dtype)
    return [points_coor, new_fea]


# ---------------------------------------------------------------------------
# Pure-JAX references (HIGHEST precision) for sanity checks
# ---------------------------------------------------------------------------
def reference_distance(xyz_cf):
    x = jnp.transpose(xyz_cf, (0, 2, 1)).astype(jnp.float32)  # (B, N, 3)
    hp = jax.lax.Precision.HIGHEST
    sq = jnp.sum(x ** 2, -1)
    return (-2.0 * jnp.einsum("bmc,bnc->bmn", x, x, precision=hp)
            + sq[:, :, None] + sq[:, None, :])


def reference_forward(points_coor, points_fea, params, *, radius, nsample,
                      group_idx=None):
    coor_nlc = jnp.transpose(points_coor, (0, 2, 1))
    fea_nlc = jnp.transpose(points_fea, (0, 2, 1))
    xyz = coor_nlc[..., :3]
    hp = jax.lax.Precision.HIGHEST
    if group_idx is None:
        dist = reference_distance(points_coor[:, :3, :])
        neg_vals, idx = jax.lax.top_k(-dist, nsample)
        vals = -neg_vals
        group_idx = jnp.where(vals > radius ** 2, idx[:, :, :1], idx)
    g_coor = (index_points(xyz, group_idx) - xyz[:, :, None, :]) / radius
    g_fea = index_points(fea_nlc, group_idx)
    g = jnp.concatenate([g_fea, g_coor], axis=-1)             # (B, N, G, C+3)
    h = jnp.maximum(jnp.einsum("bngi,ic->bngc", g, params["w_la"], precision=hp), 0.0)
    f = jnp.max(h, axis=2)                                    # (B, N, C)
    z = jnp.maximum(jnp.einsum("bnc,ce->bne", f, params["w1"], precision=hp), 0.0)
    y = jnp.einsum("bne,ec->bnc", z, params["w2"], precision=hp)
    out = jnp.maximum(y + fea_nlc, 0.0)
    return jnp.transpose(out, (0, 2, 1))


# ---------------------------------------------------------------------------
if __name__ == "__main__":
    B, C, N = 2, 16, 32
    coor_dim, radius, nsample, expansion = 3, 0.2, 8, 4
    Cin = C + coor_dim
    C4 = C * expansion

    key = jax.random.PRNGKey(0)
    k1, k2, k3, k4, k5 = jax.random.split(key, 5)

    points_coor = jax.random.uniform(k1, (B, coor_dim, N), jnp.float32)
    points_fea = jax.random.normal(k2, (B, C, N), jnp.float32)

    params = {
        # LocalAggregation mlp: Conv2d(C+3 -> C, 1x1, bias=False)
        "w_la": jax.random.normal(k3, (Cin, C), jnp.float32) / np.sqrt(Cin),
        # pw_conv: Conv1d(C -> 4C, bias=False), ReLU, Conv1d(4C -> C, bias=False)
        "w1": jax.random.normal(k4, (C, C4), jnp.float32) / np.sqrt(C),
        "w2": jax.random.normal(k5, (C4, C), jnp.float32) / np.sqrt(C4),
    }

    # --- check 1: Pallas tiled distance kernel vs pure-JAX distance ---------
    d_pallas = jax.block_until_ready(pairwise_distance(points_coor[:, :3, :]))
    d_ref = jax.block_until_ready(reference_distance(points_coor[:, :3, :]))
    np.testing.assert_allclose(np.asarray(d_pallas), np.asarray(d_ref),
                               rtol=1e-4, atol=1e-4)

    # Shared grouping (built from the Pallas distance kernel) so the fused-MLP
    # comparison is not sensitive to top_k tie-breaking on near-equal dists.
    gidx = jax.block_until_ready(query_hybrid(radius, nsample, points_coor[:, :3, :]))

    ref_fea = jax.block_until_ready(
        reference_forward(points_coor, points_fea, params,
                          radius=radius, nsample=nsample, group_idx=gidx))

    # --- check 2: f32 fused kernel (strict tolerance) ------------------------
    # NOTE: the bf16-MXU path (compute_dtype=jnp.bfloat16) is available for
    # real TPU runs, but is intentionally not exercised here because the
    # interpret-mode CPU backend cannot execute bf16 x bf16 -> f32 dots.
    _, out_f32 = invres_mlp_forward(points_coor, points_fea, params,
                                    radius=radius, nsample=nsample,
                                    compute_dtype=jnp.float32, group_idx=gidx)
    out_f32 = jax.block_until_ready(out_f32)
    assert out_f32.shape == (B, C, N)
    np.testing.assert_allclose(np.asarray(out_f32), np.asarray(ref_fea),
                               rtol=1e-4, atol=1e-4)

    print("KERNEL_OK")
</pallas_src>

<mosaic_0001>
module attributes {stable_mosaic.version = 11 : i64} {
  func.func @_pairwise_dist_kernel(%arg0: i32, %arg1: i32, %arg2: i32, %arg3: memref<1x32x8xf32, #tpu.memory_space<vmem>>, %arg4: memref<1x8x32xf32, #tpu.memory_space<vmem>>, %arg5: memref<1x32x32xf32, #tpu.memory_space<vmem>>) attributes {dimension_semantics = [#tpu.dimension_semantics<parallel>, #tpu.dimension_semantics<parallel>, #tpu.dimension_semantics<parallel>], iteration_bounds = array<i64: 2, 1, 1>, scalar_prefetch = 0 : i64, scratch_operands = 0 : i64, tpu.core_type = #tpu.core_type<tc>, window_params = [{transform_indices = @transform_0, window_bounds = array<i64: 1, 32, 8>}, {transform_indices = @transform_1, window_bounds = array<i64: 1, 8, 32>}, {transform_indices = @transform_2, window_bounds = array<i64: 1, 32, 32>}]} {
    %c0 = arith.constant 0 : index
    %c0_0 = arith.constant 0 : index
    %c0_1 = arith.constant 0 : index
    %0 = vector.load %arg3[%c0, %c0_0, %c0_1] : memref<1x32x8xf32, #tpu.memory_space<vmem>>, vector<1x32x8xf32>
    %1 = vector.shape_cast %0 : vector<1x32x8xf32> to vector<32x8xf32>
    %c0_2 = arith.constant 0 : index
    %c0_3 = arith.constant 0 : index
    %c0_4 = arith.constant 0 : index
    %2 = vector.load %arg4[%c0_2, %c0_3, %c0_4] : memref<1x8x32xf32, #tpu.memory_space<vmem>>, vector<1x8x32xf32>
    %3 = vector.shape_cast %2 : vector<1x8x32xf32> to vector<8x32xf32>
    %cst = arith.constant dense<0.000000e+00> : vector<32x32xf32>
    %4 = tpu.matmul %1, %3, %cst {dimension_numbers = #tpu.dot_dimension_numbers<[1], [0], [0], [1], [0, 0, 1, 1], [], []>} : vector<32x8xf32>, vector<8x32xf32>, vector<32x32xf32> -> vector<32x32xf32>
    %c0_5 = arith.constant 0 : index
    %c0_6 = arith.constant 0 : index
    %c0_7 = arith.constant 0 : index
    %5 = vector.load %arg5[%c0_5, %c0_6, %c0_7] : memref<1x32x32xf32, #tpu.memory_space<vmem>>, vector<1x32x32xf32>
    %6 = vector.shape_cast %5 : vector<1x32x32xf32> to vector<32x32xf32>
    %7 = vector.shape_cast %4 : vector<32x32xf32> to vector<1x32x32xf32>
    tpu.vector_store %arg5[%c0_5, %c0_6, %c0_7], %7 {strides = array<i32>} : memref<1x32x32xf32, #tpu.memory_space<vmem>>, vector<1x32x32xf32>,
    return
  }
  func.func @transform_0(%arg0: i32, %arg1: i32, %arg2: i32) -> (i32, i32, i32) {
    %c0_i32 = arith.constant 0 : i32
    %c0_i32_0 = arith.constant 0 : i32
    return %arg0, %arg1, %c0_i32 : i32, i32, i32
  }
  func.func @transform_1(%arg0: i32, %arg1: i32, %arg2: i32) -> (i32, i32, i32) {
    %c0_i32 = arith.constant 0 : i32
    %c0_i32_0 = arith.constant 0 : i32
    return %arg0, %c0_i32, %arg2 : i32, i32, i32
  }
  func.func @transform_2(%arg0: i32, %arg1: i32, %arg2: i32) -> (i32, i32, i32) {
    %c0_i32 = arith.constant 0 : i32
    return %arg0, %arg1, %arg2 : i32, i32, i32
  }
}

</mosaic_0001>

<llo_original>
// kernel: tpu_custom_call.1
$region0: #{tpu_custom_call.1}
  #allocation0 [shape = 'u32[]', space=smem, size = 0x4, offset = 0x4, fixed_abs, tag = 'smem constant byte address 0x4 - core index']
  #allocation1 [shape = 'u32[144,128]{1,0:T(1,128)}', space=vmem, size = 0x12000, scoped, tag = 'internal scratch']
  %s0 = inlined_call_operand.vmem [shape: f32[2,32,8], index: 0, kind: input, shape index: {}]
  %s1 = inlined_call_operand.vmem [shape: f32[2,8,32], index: 1, kind: input, shape index: {}]
  %s2 = inlined_call_operand.hbm [shape: f32[2,32,32], index: 2, kind: output, shape index: {}]
  %s3 = sld [smem:[#allocation0]]
  $region41: #{tpu_custom_call.1} parent=0
    _
  %s5 = ssub.s32 1, %s3
  %s6 = scalar_select 0, %s5, %s3
  $region1: #{tpu_custom_call.1} parent=0
    #allocation2 [shape = 'u8[32768]{0}', space=vmem, size = 0x8000, scoped, tag = 'output window, operand 0']
    #allocation3 [shape = 's32[2]{0}', space=sflag, size = 0x8, scoped, tag = 'scoped memory for tpu_custom_call.1']
    %7 = vsyncpa [#allocation3], 0
    %s8 = scalar_lea.sflag [#allocation3], 1
    %9 = vsyncpa %s8, 0
    loop: start=0, step=1, limit=4
    $region2: #{tpu_custom_call.1} parent=1 // loop_pre_header
      _
    $region3: #{tpu_custom_call.1} parent=1 // loop_header
      %s11 = sphi 0, %s15
      %p12 = scmp.ge.s32.totalorder %s11, 4
      %s18 = sphi 0, %s37
      %s19 = sphi 0, %s33
      %s20 = sphi 0, %s29
      %s21 = sphi 0, %s18
      %s22 = sphi 0, %s19
      %s23 = sphi 0, %s20
      %s24 = sphi 0, %s21
      %s25 = sphi 0, %s22
      %s26 = sphi 0, %s23
      %s42 = sphi 0, %s44
      %s45 = sphi 0, %s42
      %s46 = sphi 0, %s45
      %s62 = sphi 0, %s46
      %s70 = sphi 0, %s72
      %s73 = sphi 0, %s70
      %s74 = sphi 0, %s73
      %s90 = sphi 0, %s74
      %s100 = sphi 0, %s102
      %s103 = sphi 0, %s100
      %s104 = sphi 0, %s103
      %s120 = sphi 0, %s104
    $region4: #{tpu_custom_call.1} parent=1 // loop_header_branch
      %14 = sbr.rel (%p12) target = $region8
    $region5: #{tpu_custom_call.1} parent=1 // loop_body
      %s16 = ssub.s32 %s11, 1
      %s17 = ssub.s32 %s11, 2
      %s27 = sadd.s32 1, %s20
      %p28 = scmp.ge.s32.totalorder %s27, 1
      %s29 = scalar_select %p28, 0, %s27
      %s30 = sadd.s32 1, %s19
      %s31 = scalar_select %p28, %s30, %s19
      %p32 = scmp.ge.s32.totalorder %s31, 1
      %s33 = scalar_select %p32, 0, %s31
      %s34 = sadd.s32 1, %s18
      %s35 = scalar_select %p32, %s34, %s18
      %p36 = scmp.ge.s32.totalorder %s35, 2
      %s37 = scalar_select %p36, 0, %s35
      %s38 = ssub.s32 %s18, %s37
      %s39 = ssub.s32 %s19, %s33
      %s40 = sor.u32 %s38, %s39
      %p41 = scmp.eq.s32.totalorder %s40, 0
      %s43 = sadd.s32 %s42, 1
      %s44 = scalar_select %p41, %s42, %s43
      %p47 = pneg %p41
      %p48 = scmp.eq.s32.totalorder %s11, 1
      %p49 = por %p47, %p48
      %p50 = scmp.ne.s32.totalorder %s42, %s45
      %p51 = scmp.eq.s32.totalorder %s11, 0
      %p52 = por %p50, %p51
      %p53 = scmp.ne.s32.totalorder %s42, %s45
      %p54 = scmp.eq.s32.totalorder %s16, 1
      %p55 = por %p53, %p54
      %p56 = scmp.ne.s32.totalorder %s45, %s46
      %p57 = scmp.eq.s32.totalorder %s16, 0
      %p58 = por %p56, %p57
      %p59 = scmp.ne.s32.totalorder %s45, %s46
      %p60 = scmp.eq.s32.totalorder %s17, 1
      %p61 = por %p59, %p60
      %p63 = scmp.ne.s32.totalorder %s46, %s62
      %p64 = scmp.eq.s32.totalorder %s17, 0
      %p65 = por %p63, %p64
      %s66 = ssub.s32 %s18, %s37
      %s67 = ssub.s32 %s20, %s29
      %s68 = sor.u32 %s66, %s67
      %p69 = scmp.eq.s32.totalorder %s68, 0
      %s71 = sadd.s32 %s70, 1
      %s72 = scalar_select %p69, %s70, %s71
      %p75 = pneg %p69
      %p76 = scmp.eq.s32.totalorder %s11, 1
      %p77 = por %p75, %p76
      %p78 = scmp.ne.s32.totalorder %s70, %s73
      %p79 = scmp.eq.s32.totalorder %s11, 0
      %p80 = por %p78, %p79
      %p81 = scmp.ne.s32.totalorder %s70, %s73
      %p82 = scmp.eq.s32.totalorder %s16, 1
      %p83 = por %p81, %p82
      %p84 = scmp.ne.s32.totalorder %s73, %s74
      %p85 = scmp.eq.s32.totalorder %s16, 0
      %p86 = por %p84, %p85
      %p87 = scmp.ne.s32.totalorder %s73, %s74
      %p88 = scmp.eq.s32.totalorder %s17, 1
      %p89 = por %p87, %p88
      %p91 = scmp.ne.s32.totalorder %s74, %s90
      %p92 = scmp.eq.s32.totalorder %s17, 0
      %p93 = por %p91, %p92
      %s94 = ssub.s32 %s18, %s37
      %s95 = ssub.s32 %s19, %s33
      %s96 = sor.u32 %s94, %s95
      %s97 = ssub.s32 %s20, %s29
      %s98 = sor.u32 %s96, %s97
      %p99 = scmp.eq.s32.totalorder %s98, 0
      %s101 = sadd.s32 %s100, 1
      %s102 = scalar_select %p99, %s100, %s101
      %p105 = pneg %p99
      %p106 = scmp.eq.s32.totalorder %s11, 1
      %p107 = por %p105, %p106
      %p108 = scmp.ne.s32.totalorder %s100, %s103
      %p109 = scmp.eq.s32.totalorder %s11, 0
      %p110 = por %p108, %p109
      %p111 = scmp.ne.s32.totalorder %s100, %s103
      %p112 = scmp.eq.s32.totalorder %s16, 1
      %p113 = por %p111, %p112
      %p114 = scmp.ne.s32.totalorder %s103, %s104
      %p115 = scmp.eq.s32.totalorder %s16, 0
      %p116 = por %p114, %p115
      %p117 = scmp.ne.s32.totalorder %s103, %s104
      %p118 = scmp.eq.s32.totalorder %s17, 1
      %p119 = por %p117, %p118
      %p121 = scmp.ne.s32.totalorder %s104, %s120
      %p122 = scmp.eq.s32.totalorder %s17, 0
      %p123 = por %p121, %p122
      %p124 = scmp.le.s32.totalorder 1, %s11
      %p125 = scmp.lt.s32.totalorder %s11, 3
      %p126 = pnand %p124, %p125
      %p127 = pneg %p126
      // Predicated region
      $region9: #{tpu_custom_call.1} parent=5 // pred_check
        _
      $region10: #{tpu_custom_call.1} parent=5 // pred_check_branch
        %129 = sbr.rel (%p126) target = $region12
      $region11: #{tpu_custom_call.1} parent=5 // pred_region
        %s130 = ssub.s32 %s11, 1
      $region12: #{tpu_custom_call.1} parent=5 // pred_fallthru
        _
      %p131 = scmp.lt.s32.totalorder %s11, 2
      // Predicated region
      $region13: #{tpu_custom_call.1} parent=5 // pred_check
        %p132 = pneg %p131
      $region14: #{tpu_custom_call.1} parent=5 // pred_check_branch
        %134 = sbr.rel (%p132) target = $region16
      $region15: #{tpu_custom_call.1} parent=5 // pred_region
        // Predicated region
        $region17: #{tpu_custom_call.1} parent=15 // pred_check
          %p135 = pneg %p52
        $region18: #{tpu_custom_call.1} parent=15 // pred_check_branch
          %137 = sbr.rel (%p135) target = $region20
        $region19: #{tpu_custom_call.1} parent=15 // pred_region
          %s138 = smul.u32 4, %s19
          %p139 = scmp.lt.s32.totalorder %s18, 1
          %s140 = scalar_select %p139, %s18, 1
          %p141 = scmp.lt.s32.totalorder %s138, 3
          %s142 = scalar_select %p141, %s138, 3
          %s143 = smul.addr %s140, 4
          %s144 = sadd.s32 %s142, %s143
          %s145 = smul.addr %s144, 8
          %s146 = scalar_lea.vmem %s0, %s145
          %s147 = smul.u32 4, %s19
        $region20: #{tpu_custom_call.1} parent=15 // pred_fallthru
          _
        // Predicated region
        $region21: #{tpu_custom_call.1} parent=15 // pred_check
          %p148 = pneg %p80
        $region22: #{tpu_custom_call.1} parent=15 // pred_check_branch
          %150 = sbr.rel (%p148) target = $region24
        $region23: #{tpu_custom_call.1} parent=15 // pred_region
          %p151 = scmp.lt.s32.totalorder %s18, 1
          %s152 = scalar_select %p151, %s18, 1
          %p153 = scmp.lt.s32.totalorder %s20, 0
          %s154 = scalar_select %p153, %s20, 0
          %s155 = sadd.s32 %s154, %s152
          %s156 = smul.addr %s155, 8
          %s157 = scalar_lea.vmem %s1, %s156
        $region24: #{tpu_custom_call.1} parent=15 // pred_fallthru
          _
      $region16: #{tpu_custom_call.1} parent=5 // pred_fallthru
        _
      %p158 = scmp.le.s32.totalorder 1, %s11
      %p159 = scmp.lt.s32.totalorder %s11, 3
      %p160 = pnand %p158, %p159
      %p161 = pneg %p160
      // Predicated region
      $region25: #{tpu_custom_call.1} parent=5 // pred_check
        _
      $region26: #{tpu_custom_call.1} parent=5 // pred_check_branch
        %163 = sbr.rel (%p160) target = $region28
      $region27: #{tpu_custom_call.1} parent=5 // pred_region
        %s164 = ssub.s32 %s11, 1
        %s165 = smul.u32 4, %s22
        %p166 = scmp.lt.s32.totalorder %s21, 1
        %s167 = scalar_select %p166, %s21, 1
        %p168 = scmp.lt.s32.totalorder %s165, 3
        %s169 = scalar_select %p168, %s165, 3
        %s170 = smul.addr %s167, 4
        %s171 = sadd.s32 %s169, %s170
        %s172 = smul.addr %s171, 8
        %s173 = scalar_lea.vmem %s0, %s172
        %p174 = pneg %p58
        %p175 = pneg %p55
        %p176 = scmp.lt.s32.totalorder %s21, 1
        %s177 = scalar_select %p176, %s21, 1
        %p178 = scmp.lt.s32.totalorder %s23, 0
        %s179 = scalar_select %p178, %s23, 0
        %s180 = sadd.s32 %s179, %s177
        %s181 = smul.addr %s180, 8
        %s182 = scalar_lea.vmem %s1, %s181
        %p183 = pneg %p86
        %p184 = pneg %p83
        %p185 = pneg %p116
        %p186 = pneg %p113
        %s187 = sand.u32 %s103, 1
        %s188 = scalar_lea.sflag [#allocation3], %s187
        %s189 = sand.u32 %s103, 1
        %s190 = smul.addr %s189, 32
        %s191 = scalar_lea.vmem [#allocation2], %s190
        %s192 = smul.u32 4, %s22
        %p193 = scmp.lt.s32.totalorder %s21, 1
        %s194 = scalar_select %p193, %s21, 1
        %p195 = scmp.lt.s32.totalorder %s192, 3
        %s196 = scalar_select %p195, %s192, 3
        %s197 = smul.addr %s194, 4
        %s198 = sadd.s32 %s196, %s197
        %s199 = smul.addr %s198, 8
        %s200 = scalar_lea.vmem %s0, %s199
        %s201 = smul.u32 4, %s22
        %p202 = scmp.lt.s32.totalorder %s21, 1
        %s203 = scalar_select %p202, %s21, 1
        %p204 = scmp.lt.s32.totalorder %s23, 0
        %s205 = scalar_select %p204, %s23, 0
        %s206 = sadd.s32 %s205, %s203
        %s207 = smul.addr %s206, 8
        %s208 = scalar_lea.vmem %s1, %s207
        %s209 = smul.u32 4, %s22
        %v210 = vld [vmem:[%s200] sm:$0xff]
        %v211 = vld [vmem:[%s200 + $0x8] sm:$0xff]
        %v212 = vld [vmem:[%s200 + $0x10] sm:$0xff]
        %v213 = vld [vmem:[%s200 + $0x18] sm:$0xff]
        %v214 = vld [vmem:[%s208] sm:$0xff]
        %vm215 = vcmask 64512
        %v217 = vsel %vm215, %v210, 0
        %v220 = vsel %vm215, %v211, 0
        %v223 = vsel %vm215, %v212, 0
        %v226 = vsel %vm215, %v213, 0
        %228 = vmatprep.subr.mxu0 0.0
        %229 = vmatpush1.msra.mxu0 0.0
        %230 = vmatprep.subr.mxu0 0.0
        %231 = vmatpush1.msra.mxu0 0.0
        %232 = vmatprep.subr.mxu0 0.0
        %233 = vmatpush1.msra.mxu0 0.0
        %234 = vmatprep.subr.mxu0 0.0
        %235 = vmatpush1.msra.mxu0 0.0
        %236 = vmatprep.subr.mxu0 0.0
        %237 = vmatpush1.msra.mxu0 0.0
        %238 = vmatprep.subr.mxu0 0.0
        %239 = vmatpush1.msra.mxu0 0.0
        %240 = vmatprep.subr.mxu0 0.0
        %241 = vmatpush1.msra.mxu0 0.0
        %242 = vmatprep.subr.mxu0 0.0
        %243 = vmatpush1.msra.mxu0 0.0
        %244 = vmatprep.subr.mxu0 0.0
        %245 = vmatpush1.msra.mxu0 0.0
        %246 = vmatprep.subr.mxu0 0.0
        %247 = vmatpush1.msra.mxu0 0.0
        %248 = vmatprep.subr.mxu0 0.0
        %249 = vmatpush1.msra.mxu0 0.0
        %250 = vmatprep.subr.mxu0 0.0
        %251 = vmatpush1.msra.mxu0 0.0
        %252 = vmatprep.subr.mxu0 0.0
        %253 = vmatpush1.msra.mxu0 0.0
        %254 = vmatprep.subr.mxu0 0.0
        %255 = vmatpush1.msra.mxu0 0.0
        %256 = vmatprep.subr.mxu0 0.0
        %257 = vmatpush1.msra.mxu0 0.0
        %258 = vmatprep.subr.mxu0 0.0
        %259 = vmatpush1.msra.mxu0 %v214
        %260 = vmatprep.subr.mxu0 0.0
        %261 = vmatpush2.msra.mxu0 0.0
        %262 = vmatprep.subr.mxu0 0.0
        %263 = vmatpush2.msra.mxu0 0.0
        %264 = vmatprep.subr.mxu0 0.0
        %265 = vmatpush2.msra.mxu0 0.0
        %266 = vmatprep.subr.mxu0 0.0
        %267 = vmatpush2.msra.mxu0 0.0
        %268 = vmatprep.subr.mxu0 0.0
        %269 = vmatpush2.msra.mxu0 0.0
        %270 = vmatprep.subr.mxu0 0.0
        %271 = vmatpush2.msra.mxu0 0.0
        %272 = vmatprep.subr.mxu0 0.0
        %273 = vmatpush2.msra.mxu0 0.0
        %274 = vmatprep.subr.mxu0 0.0
        %275 = vmatpush2.msra.mxu0 0.0
        %276 = vmatprep.subr.mxu0 0.0
        %277 = vmatpush2.msra.mxu0 0.0
        %278 = vmatprep.subr.mxu0 0.0
        %279 = vmatpush2.msra.mxu0 0.0
        %280 = vmatprep.subr.mxu0 0.0
        %281 = vmatpush2.msra.mxu0 0.0
        %282 = vmatprep.subr.mxu0 0.0
        %283 = vmatpush2.msra.mxu0 0.0
        %284 = vmatprep.subr.mxu0 0.0
        %285 = vmatpush2.msra.mxu0 0.0
        %286 = vmatprep.subr.mxu0 0.0
        %287 = vmatpush2.msra.mxu0 0.0
        %288 = vmatprep.subr.mxu0 0.0
        %289 = vmatpush2.msra.mxu0 0.0
        %290 = vmatprep.subr.mxu0 0.0
        %291 = vmatpush2.msra.mxu0 0.0
        %292 = vmatprep.mubr.f32.mxu0 0.0
        %293 = vmatmul.mubr.f32.gmra.mxu0 %v217
        %v294 = vpop.f32.mrf.mxu0
        %v295 = vadd.f32 0.0, %v294
        %v296 = vpop.f32.mrf.mxu0
        %297 = vmatprep.mubr.f32.mxu0 0.0
        %298 = vmatmul.mubr.f32.gmra.mxu0 %v220
        %v299 = vpop.f32.mrf.mxu0
        %v300 = vadd.f32 0.0, %v299
        %v301 = vpop.f32.mrf.mxu0
        %302 = vmatprep.mubr.f32.mxu0 0.0
        %303 = vmatmul.mubr.f32.gmra.mxu0 %v223
        %v304 = vpop.f32.mrf.mxu0
        %v305 = vadd.f32 0.0, %v304
        %v306 = vpop.f32.mrf.mxu0
        %307 = vmatprep.mubr.f32.mxu0 0.0
        %308 = vmatmul.mubr.f32.gmra.mxu0 %v226
        %v309 = vpop.f32.mrf.mxu0
        %v310 = vadd.f32 0.0, %v309
        %v311 = vpop.f32.mrf.mxu0
        %312 = vdwg.mxu0
        %vm313 = vcmask 261120
        %314 = vst.msk [vmem:[%s191] sm:$0xff] %vm313, %v295
        %315 = vst.msk [vmem:[%s191 + $0x8] sm:$0xff] %vm313, %v300
        %316 = vst.msk [vmem:[%s191 + $0x10] sm:$0xff] %vm313, %v305
        %317 = vst.msk [vmem:[%s191 + $0x18] sm:$0xff] %vm313, %v310
        %s318 = sand.u32 %s103, 1
        %s319 = scalar_lea.sflag [#allocation3], %s318
        %s320 = sand.u32 %s103, 1
        %s321 = smul.addr %s320, 32
        %s322 = scalar_lea.vmem [#allocation2], %s321
        // Predicated region
        $region29: #{tpu_custom_call.1} parent=27 // pred_check
          %p323 = pneg %p113
        $region30: #{tpu_custom_call.1} parent=27 // pred_check_branch
          %325 = sbr.rel (%p323) target = $region32
        $region31: #{tpu_custom_call.1} parent=27 // pred_region
          %s326 = smul.u32 4, %s22
          %s328 = ssub.s32 512, 512
          %329 = vsyncadd %s319, %s328
          %s330 = sadd.s32 %s23, %s326
          %s331 = smul.addr %s21, 4
          %s332 = sadd.s32 %s330, %s331
          %s333 = smul.addr %s332, 128
          %s334 = scalar_lea.hbm %s2, %s333
          %s335 = sshll.u32 %s322, 4
          %s336 = int_to_ptr.vmem [resolvable:$true] %s335
          %341 = dma.vmem_to_hbm [thread:$0]  %s336, 512, %s334, %s319, 128, 128, 8
        $region32: #{tpu_custom_call.1} parent=27 // pred_fallthru
          _
      $region28: #{tpu_custom_call.1} parent=5 // pred_fallthru
        _
      %p342 = scmp.le.s32.totalorder 2, %s11
      // Predicated region
      $region33: #{tpu_custom_call.1} parent=5 // pred_check
        %p343 = pneg %p342
      $region34: #{tpu_custom_call.1} parent=5 // pred_check_branch
        %345 = sbr.rel (%p343) target = $region36
      $region35: #{tpu_custom_call.1} parent=5 // pred_region
        %s346 = ssub.s32 %s11, 2
        // Predicated region
        $region37: #{tpu_custom_call.1} parent=35 // pred_check
          %p347 = pneg %p119
        $region38: #{tpu_custom_call.1} parent=35 // pred_check_branch
          %349 = sbr.rel (%p347) target = $region40
        $region39: #{tpu_custom_call.1} parent=35 // pred_region
          %s350 = sand.u32 %s104, 1
          %s351 = scalar_lea.sflag [#allocation3], %s350
          %s352 = sand.u32 %s104, 1
          %s353 = smul.addr %s352, 32
          %s354 = scalar_lea.vmem [#allocation2], %s353
          %355 = dma.done %s351, 512
        $region40: #{tpu_custom_call.1} parent=35 // pred_fallthru
          _
      $region36: #{tpu_custom_call.1} parent=5 // pred_fallthru
        _
    $region6: #{tpu_custom_call.1} parent=1 // loop_footer
      %s15 = sadd.s32 1, %s11
    $region7: #{tpu_custom_call.1} parent=1 // loop_footer_branch
      %10 = sbr.rel target = $region3
    $region8: #{tpu_custom_call.1} parent=1 // loop_exit
      _
    %356 = vsyncpa [#allocation3], 1
    %s357 = scalar_lea.sflag [#allocation3], 1
    %358 = vsyncpa %s357, 1

</llo_original>
